<compile_context>
chip_gen: v5e
topology: v5e:2x2
jax: 0.10.0
libtpu: 0.0.40
codegen_flags: <defaults>
</compile_context>

<pallas_src>
import math

import jax
import jax.numpy as jnp
import numpy as np
from jax.experimental import pallas as pl
from jax.experimental.pallas import tpu as pltpu

_PER_BUFFER_BYTES = 4 * 1024 * 1024  # per-tile VMEM budget (per array)
_VMEM_LIMIT_BYTES = 48 << 20         # fits v7x's 64 MiB physical VMEM


# ---------------------------------------------------------------------------
# Kernels
# ---------------------------------------------------------------------------
def _add_pe_kernel_3d(x_ref, pe_ref, o_ref):
    # x_ref / o_ref: (1, TS, D) tile of one batch element / one sequence tile.
    # pe_ref:        (TS, D)    matching PE tile (broadcast over the batch dim).
    o_ref[...] = (x_ref[...].astype(jnp.float32)
                  + pe_ref[...].astype(jnp.float32)).astype(o_ref.dtype)


def _add_pe_kernel_flat(x_ref, pe_ref, o_ref):
    # x_ref / o_ref: (TB, TL) tile of the lane-flattened (B, S*D) view.
    # pe_ref:        (1, TL)  matching flattened PE tile (broadcast over batch).
    o_ref[...] = (x_ref[...].astype(jnp.float32)
                  + pe_ref[...].astype(jnp.float32)).astype(o_ref.dtype)


# ---------------------------------------------------------------------------
# PE table (trace-time, identical to the PyTorch registered buffer)
# ---------------------------------------------------------------------------
def _build_pe_table(seq_len, dim):
    position = jnp.arange(seq_len, dtype=jnp.float32)[:, None]            # (S, 1)
    div_term = jnp.exp(jnp.arange(0, dim, 2, dtype=jnp.float32)
                       * (-math.log(10000.0) / dim))                      # (D/2,)
    angles = position * div_term                                          # (S, D/2)
    # interleave: pe[:, 0::2] = sin, pe[:, 1::2] = cos
    pe = jnp.stack([jnp.sin(angles), jnp.cos(angles)], axis=-1)           # (S, D/2, 2)
    return pe.reshape(seq_len, dim)                                       # (S, D)


# ---------------------------------------------------------------------------
# Tile selection
# ---------------------------------------------------------------------------
def _choose_seq_tile(seq_len, dim, dtype_bytes):
    """Sequence tile so each (TS, D) buffer stays <= ~4 MiB (pe is f32)."""
    bytes_per = max(dtype_bytes, 4)
    max_ts = max(8, _PER_BUFFER_BYTES // max(1, dim * bytes_per))
    for cand in (2048, 1024, 512, 256, 128, 64, 32, 16, 8):
        if cand <= max_ts and seq_len % cand == 0:
            return cand
    return seq_len  # full-extent sequence block (always legal)


def _choose_flat_tiles(batch, flat, dtype_bytes):
    """(TB, TL) tiles for the lane-flattened (B, S*D) view."""
    bytes_per = max(dtype_bytes, 4)
    # Lane tile: largest multiple of 128 dividing `flat` within budget,
    # else the full extent (always a legal block shape).
    tl = flat
    for cand in (131072, 65536, 32768, 16384, 8192, 4096, 2048, 1024, 512, 256, 128):
        if flat % cand == 0 and cand * bytes_per <= _PER_BUFFER_BYTES:
            tl = cand
            break
    # Batch tile: full B if it fits, else a multiple of 8 dividing B, else 1.
    if batch * tl * bytes_per <= _PER_BUFFER_BYTES:
        tb = batch
    else:
        tb = 1
        for cand in (64, 32, 16, 8):
            if batch % cand == 0 and cand * tl * bytes_per <= _PER_BUFFER_BYTES:
                tb = cand
                break
    return tb, tl


# ---------------------------------------------------------------------------
# Public wrapper
# ---------------------------------------------------------------------------
def sinusoidal_positional_encoding(x, max_len=512, donate_x=False):
    """x: (B, S, D) array. Returns x + pe[:, :S, :] (PyTorch forward semantics)."""
    B, S, D = x.shape
    assert S <= max_len, "seq_len exceeds max_len of the PE buffer"
    assert D % 2 == 0, "dim must be even (matches the PyTorch buffer layout)"

    pe = _build_pe_table(S, D)                      # (S, D) float32, built once
    dtype_bytes = jnp.dtype(x.dtype).itemsize
    compiler_params = pltpu.CompilerParams(
        dimension_semantics=("parallel", "parallel"),
        vmem_limit_bytes=_VMEM_LIMIT_BYTES,
    )
    aliases = {0: 0} if donate_x else {}

    if D % 128 == 0:
        # Lane-dense already: keep the 3-D view, tile the sequence axis.
        ts = _choose_seq_tile(S, D, dtype_bytes)
        grid = (S // ts, B)                          # batch innermost -> pe stays resident
        call = pl.pallas_call(
            _add_pe_kernel_3d,
            out_shape=jax.ShapeDtypeStruct((B, S, D), x.dtype),
            grid_spec=pl.GridSpec(
                grid=grid,
                in_specs=[
                    pl.BlockSpec((1, ts, D), lambda s, b: (b, s, 0)),   # x tile
                    pl.BlockSpec((ts, D), lambda s, b: (s, 0)),         # pe tile (b-invariant)
                ],
                out_specs=pl.BlockSpec((1, ts, D), lambda s, b: (b, s, 0)),
            ),
            compiler_params=compiler_params,
            input_output_aliases=aliases,
        )
        return call(x, pe)

    # Small / unaligned D: flatten (B, S, D) -> (B, S*D) so stores are
    # lane-dense (avoids masked vst.msk partial stores for D < 128).
    flat = S * D
    x2 = x.reshape(B, flat)                          # contiguous -> free reshape
    pe2 = pe.reshape(1, flat)
    tb, tl = _choose_flat_tiles(B, flat, dtype_bytes)
    grid = (flat // tl, B // tb)                     # batch innermost -> pe stays resident
    call = pl.pallas_call(
        _add_pe_kernel_flat,
        out_shape=jax.ShapeDtypeStruct((B, flat), x.dtype),
        grid_spec=pl.GridSpec(
            grid=grid,
            in_specs=[
                pl.BlockSpec((tb, tl), lambda l, b: (b, l)),            # x tile
                pl.BlockSpec((1, tl), lambda l, b: (0, l)),             # pe tile (b-invariant)
            ],
            out_specs=pl.BlockSpec((tb, tl), lambda l, b: (b, l)),
        ),
        compiler_params=compiler_params,
        input_output_aliases=aliases,
    )
    return call(x2, pe2).reshape(B, S, D)


# ---------------------------------------------------------------------------
# Pure-JAX reference (replicates the PyTorch buffer construction exactly)
# ---------------------------------------------------------------------------
def _reference(x, max_len=512):
    B, S, D = x.shape
    position = jnp.arange(max_len, dtype=jnp.float32)[:, None]
    div_term = jnp.exp(jnp.arange(0, D, 2, dtype=jnp.float32)
                       * (-math.log(10000.0) / D))
    pe = jnp.zeros((max_len, D), dtype=jnp.float32)
    pe = pe.at[:, 0::2].set(jnp.sin(position * div_term))
    pe = pe.at[:, 1::2].set(jnp.cos(position * div_term))
    return x + pe[None, :S, :].astype(x.dtype)


if __name__ == "__main__":
    key = jax.random.PRNGKey(0)

    # Case 1: small dim (D % 128 != 0) -> lane-flattened path.
    B, S, D = 2, 8, 32
    x = jax.random.normal(key, (B, S, D), dtype=jnp.float32)
    out = jax.block_until_ready(sinusoidal_positional_encoding(x, max_len=512))
    np.testing.assert_allclose(np.asarray(out), np.asarray(_reference(x, 512)),
                               rtol=1e-5, atol=1e-5)

    # Case 2: lane-aligned dim (D % 128 == 0) -> 3-D sequence-tiled path.
    B2, S2, D2 = 2, 16, 128
    x2 = jax.random.normal(jax.random.PRNGKey(0), (B2, S2, D2), dtype=jnp.float32)
    out2 = jax.block_until_ready(sinusoidal_positional_encoding(x2, max_len=512))
    np.testing.assert_allclose(np.asarray(out2), np.asarray(_reference(x2, 512)),
                               rtol=1e-5, atol=1e-5)

    print("KERNEL_OK")
</pallas_src>

<mosaic_0001>
module attributes {stable_mosaic.version = 11 : i64} {
  func.func @_add_pe_kernel_flat(%arg0: i32, %arg1: i32, %arg2: memref<2x256xf32, #tpu.memory_space<vmem>>, %arg3: memref<1x256xf32, #tpu.memory_space<vmem>>, %arg4: memref<2x256xf32, #tpu.memory_space<vmem>>) attributes {dimension_semantics = [#tpu.dimension_semantics<parallel>, #tpu.dimension_semantics<parallel>], iteration_bounds = array<i64: 1, 1>, scalar_prefetch = 0 : i64, scratch_operands = 0 : i64, tpu.core_type = #tpu.core_type<tc>, window_params = [{transform_indices = @transform_0, window_bounds = array<i64: 2, 256>}, {transform_indices = @transform_1, window_bounds = array<i64: 1, 256>}, {transform_indices = @transform_2, window_bounds = array<i64: 2, 256>}]} {
    %c0 = arith.constant 0 : index
    %c0_0 = arith.constant 0 : index
    %0 = vector.load %arg2[%c0, %c0_0] : memref<2x256xf32, #tpu.memory_space<vmem>>, vector<2x256xf32>
    %c0_1 = arith.constant 0 : index
    %c0_2 = arith.constant 0 : index
    %1 = vector.load %arg3[%c0_1, %c0_2] : memref<1x256xf32, #tpu.memory_space<vmem>>, vector<1x256xf32>
    %2 = vector.broadcast %1 : vector<1x256xf32> to vector<2x256xf32>
    %3 = arith.addf %0, %2 : vector<2x256xf32>
    %c0_3 = arith.constant 0 : index
    %c0_4 = arith.constant 0 : index
    %4 = vector.load %arg4[%c0_3, %c0_4] : memref<2x256xf32, #tpu.memory_space<vmem>>, vector<2x256xf32>
    tpu.vector_store %arg4[%c0_3, %c0_4], %3 {strides = array<i32>} : memref<2x256xf32, #tpu.memory_space<vmem>>, vector<2x256xf32>,
    return
  }
  func.func @transform_0(%arg0: i32, %arg1: i32) -> (i32, i32) {
    %c0_i32 = arith.constant 0 : i32
    return %arg1, %arg0 : i32, i32
  }
  func.func @transform_1(%arg0: i32, %arg1: i32) -> (i32, i32) {
    %c0_i32 = arith.constant 0 : i32
    %c0_i32_0 = arith.constant 0 : i32
    return %c0_i32, %arg0 : i32, i32
  }
  func.func @transform_2(%arg0: i32, %arg1: i32) -> (i32, i32) {
    %c0_i32 = arith.constant 0 : i32
    return %arg1, %arg0 : i32, i32
  }
}

</mosaic_0001>

<llo_original>
// kernel: tpu_custom_call.1
$region0: #{tpu_custom_call.1}
  #allocation0 [shape = 'u32[]', space=smem, size = 0x4, offset = 0x4, fixed_abs, tag = 'smem constant byte address 0x4 - core index']
  #allocation1 [shape = 'u32[72,128]{1,0:T(1,128)}', space=vmem, size = 0x9000, scoped, tag = 'internal scratch']
  %s0 = inlined_call_operand.hbm [shape: f32[2,256], index: 0, kind: input, shape index: {}]
  %s1 = inlined_call_operand.hbm [shape: f32[1,256], index: 1, kind: input, shape index: {}]
  %s2 = inlined_call_operand.hbm [shape: f32[2,256], index: 2, kind: output, shape index: {}]
  %s3 = sld [smem:[#allocation0]]
  $region26: #{tpu_custom_call.1} parent=0
    _
  %s5 = ssub.s32 1, %s3
  %s6 = scalar_select 0, %s5, %s3
  $region1: #{tpu_custom_call.1} parent=0
    #allocation2 [shape = 'u8[2048]{0}', space=vmem, size = 0x800, scoped, tag = 'input window, operand 0, single buffered']
    #allocation3 [shape = 's32[1]{0}', space=sflag, size = 0x4, scoped, tag = 'scoped memory for tpu_custom_call.1']
    #allocation4 [shape = 's32[1]{0}', space=sflag, size = 0x4, scoped, tag = 'scoped memory for tpu_custom_call.1']
    #allocation5 [shape = 'u8[1024]{0}', space=vmem, size = 0x400, scoped, tag = 'input window, operand 1, single buffered']
    #allocation6 [shape = 's32[1]{0}', space=sflag, size = 0x4, scoped, tag = 'scoped memory for tpu_custom_call.1']
    #allocation7 [shape = 'u8[2048]{0}', space=vmem, size = 0x800, scoped, tag = 'output window, operand 0, single buffered']
    %7 = vsyncpa [#allocation3], 0
    %8 = vsyncpa [#allocation6], 0
    %9 = vsyncpa [#allocation4], 0
    // Predicated region
    $region2: #{tpu_custom_call.1} parent=1 // pred_check
      _
    $region3: #{tpu_custom_call.1} parent=1 // pred_check_branch
      %11 = sbr.rel (0) target = $region5
    $region4: #{tpu_custom_call.1} parent=1 // pred_region
      %13 = vsyncadd [#allocation3], 0
      %s15 = sshll.u32 %s0, 4
      %s16 = int_to_ptr.hbm [resolvable:$true] %s15
      %s17 = sshll.u32 [#allocation2], 4
      %s18 = int_to_ptr.vmem [resolvable:$true] %s17
      %20 = dma.hbm_to_vmem [thread:$0]  %s16, 64, %s18, [#allocation3]
    $region5: #{tpu_custom_call.1} parent=1 // pred_fallthru
      _
    // Predicated region
    $region6: #{tpu_custom_call.1} parent=1 // pred_check
      _
    $region7: #{tpu_custom_call.1} parent=1 // pred_check_branch
      %22 = sbr.rel (0) target = $region9
    $region8: #{tpu_custom_call.1} parent=1 // pred_region
      %24 = vsyncadd [#allocation6], 0
      %s26 = sshll.u32 %s1, 4
      %s27 = int_to_ptr.hbm [resolvable:$true] %s26
      %s28 = sshll.u32 [#allocation5], 4
      %s29 = int_to_ptr.vmem [resolvable:$true] %s28
      %31 = dma.hbm_to_vmem [thread:$0]  %s27, 32, %s29, [#allocation6]
    $region9: #{tpu_custom_call.1} parent=1 // pred_fallthru
      _
    // Predicated region
    $region10: #{tpu_custom_call.1} parent=1 // pred_check
      _
    $region11: #{tpu_custom_call.1} parent=1 // pred_check_branch
      %33 = sbr.rel (0) target = $region13
    $region12: #{tpu_custom_call.1} parent=1 // pred_region
      %35 = dma.done [#allocation3], 64
    $region13: #{tpu_custom_call.1} parent=1 // pred_fallthru
      _
    // Predicated region
    $region14: #{tpu_custom_call.1} parent=1 // pred_check
      _
    $region15: #{tpu_custom_call.1} parent=1 // pred_check_branch
      %37 = sbr.rel (0) target = $region17
    $region16: #{tpu_custom_call.1} parent=1 // pred_region
      %39 = dma.done [#allocation6], 32
    $region17: #{tpu_custom_call.1} parent=1 // pred_fallthru
      _
    %v40 = vld [vmem:[#allocation2] sm:$0xf]
    %v41 = vld [vmem:[#allocation5] sm:$0x3]
    %v43 = vperm.slane %v41, 0
    %v44 = vperm.slane %v41, 1
    %v45 = vrot.slane %v44, 6
    %vm46 = vcmask 1041408
    %v47 = vsel %vm46, %v43, %v45
    %v49 = vadd.f32 %v40, %v47
    %50 = vst [vmem:[#allocation7] sm:$0xf] %v49
    // Predicated region
    $region18: #{tpu_custom_call.1} parent=1 // pred_check
      _
    $region19: #{tpu_custom_call.1} parent=1 // pred_check_branch
      %52 = sbr.rel (0) target = $region21
    $region20: #{tpu_custom_call.1} parent=1 // pred_region
      %54 = vsyncadd [#allocation4], 0
      %s56 = sshll.u32 [#allocation7], 4
      %s57 = int_to_ptr.vmem [resolvable:$true] %s56
      %s58 = sshll.u32 %s2, 4
      %s59 = int_to_ptr.hbm [resolvable:$true] %s58
      %61 = dma.vmem_to_hbm [thread:$0]  %s57, 64, %s59, [#allocation4]
    $region21: #{tpu_custom_call.1} parent=1 // pred_fallthru
      _
    // Predicated region
    $region22: #{tpu_custom_call.1} parent=1 // pred_check
      _
    $region23: #{tpu_custom_call.1} parent=1 // pred_check_branch
      %63 = sbr.rel (0) target = $region25
    $region24: #{tpu_custom_call.1} parent=1 // pred_region
      %65 = dma.done [#allocation4], 64
    $region25: #{tpu_custom_call.1} parent=1 // pred_fallthru
      _
    %66 = vsyncpa [#allocation3], 1
    %67 = vsyncpa [#allocation6], 1
    %68 = vsyncpa [#allocation4], 1

</llo_original>
